<compile_context>
chip_gen: v7x
topology: tpu7x:2x2x1
jax: 0.10.0
libtpu: 0.0.40
codegen_flags: <defaults>
</compile_context>

<pallas_src>
import functools
import math

import jax
import jax.numpy as jnp
from jax.experimental import pallas as pl
from jax.experimental.pallas import tpu as pltpu

_LN2 = math.log(2.0)
_VMEM_LIMIT = 32 * 1024 * 1024  # safe on v5e (128 MiB), v6e (128 MiB), v7x (64 MiB)


def _round_up(x, m):
    return ((x + m - 1) // m) * m


def _pad_last(x, target):
    pad = target - x.shape[-1]
    if pad == 0:
        return x
    cfg = [(0, 0)] * (x.ndim - 1) + [(0, pad)]
    return jnp.pad(x, cfg)


# ----------------------------------------------------------------------------
# Kernel 1: gm_cls_loss hot path.  Classes on sublanes, pixels on lanes.
#   - GT = argmin_c || G[c] - x2 ||  (sublane reduction over C)
#   - per-pixel cross-entropy at GT, masked sum where prob > 0.99, mask count
#   - BCE-with-logits(gm_certainty, prob) sum
# Per grid block it writes one (8,128) partial-stats slab (lanes 0..2 of row 0).
# ----------------------------------------------------------------------------
def _gm_stats_kernel(gx_ref, gy_ref, sc_ref, logit_ref, stats_ref):
    gx = gx_ref[...]                       # (C, 1)
    gy = gy_ref[...]                       # (C, 1)
    sc = sc_ref[0]                         # (4, TN): x2x, x2y, prob, cert
    logits = logit_ref[0]                  # (C, TN)
    C = logits.shape[0]

    x2x = sc[0:1, :]                       # (1, TN)
    x2y = sc[1:2, :]
    prob = sc[2:3, :]
    cert = sc[3:4, :]

    # squared distance to every grid cell (argmin of norm == argmin of square)
    dx = gx - x2x                          # (C, TN)
    dy = gy - x2y
    d2 = dx * dx + dy * dy

    cls_idx = jax.lax.broadcasted_iota(jnp.int32, d2.shape, 0)
    mind = jnp.min(d2, axis=0, keepdims=True)
    # first index achieving the minimum (matches torch.min tie-break)
    gt = jnp.min(jnp.where(d2 <= mind, cls_idx, C), axis=0, keepdims=True)  # (1, TN)
    onehot = (cls_idx == gt).astype(jnp.float32)

    # cross entropy: logsumexp(logits) - logits[gt]   (all sublane reductions)
    m = jnp.max(logits, axis=0, keepdims=True)
    lse = m + jnp.log(jnp.sum(jnp.exp(logits - m), axis=0, keepdims=True))
    logit_gt = jnp.sum(logits * onehot, axis=0, keepdims=True)
    ce = lse - logit_gt                                                     # (1, TN)

    mask = (prob > 0.99).astype(jnp.float32)
    # BCE with logits (numerically stable torch formula)
    bce = jnp.maximum(cert, 0.0) - cert * prob + jnp.log(1.0 + jnp.exp(-jnp.abs(cert)))

    s_cls = jnp.sum(ce * mask)
    s_cnt = jnp.sum(mask)
    s_bce = jnp.sum(bce)

    lane = jax.lax.broadcasted_iota(jnp.int32, (1, 128), 1)
    row = (jnp.where(lane == 0, s_cls, 0.0)
           + jnp.where(lane == 1, s_cnt, 0.0)
           + jnp.where(lane == 2, s_bce, 0.0))
    stats_ref[0] = jnp.concatenate([row, jnp.zeros((7, 128), jnp.float32)], axis=0)


def _gm_stats(gx, gy, scalars, logits, *, tn, n_tiles):
    B, C, _ = logits.shape
    return pl.pallas_call(
        _gm_stats_kernel,
        out_shape=jax.ShapeDtypeStruct((B * n_tiles, 8, 128), jnp.float32),
        grid=(B, n_tiles),
        in_specs=[
            pl.BlockSpec((C, 1), lambda b, i: (0, 0)),
            pl.BlockSpec((C, 1), lambda b, i: (0, 0)),
            pl.BlockSpec((1, 4, tn), lambda b, i: (b, 0, i)),
            pl.BlockSpec((1, C, tn), lambda b, i: (b, 0, i)),
        ],
        out_specs=pl.BlockSpec((1, 8, 128), lambda b, i: (b * n_tiles + i, 0, 0)),
        compiler_params=pltpu.CompilerParams(
            dimension_semantics=("parallel", "parallel"),
            vmem_limit_bytes=_VMEM_LIMIT),
    )(gx, gy, scalars, logits)


# ----------------------------------------------------------------------------
# Kernel 2: regression_loss hot path (lane-dense (R, 128) layout)
#   - per-pixel end-point-error  epe = ||flow - x2||  (written out as prev_epe)
#   - robust/charbonnier term, masked partial sums; BCE-with-logits partial sums
# Per grid block: one (8,128) slab of sublane-wise partial sums
#   row 0 = sum(reg*mask), row 1 = sum(mask), row 2 = sum(bce); rows 3..7 zero.
# ----------------------------------------------------------------------------
def _reg_stats_kernel(x2x_ref, x2y_ref, fx_ref, fy_ref, prob_ref, cert_ref,
                      stats_ref, epe_ref, *, cs, alpha):
    dx = fx_ref[...] - x2x_ref[...]
    dy = fy_ref[...] - x2y_ref[...]
    d2 = dx * dx + dy * dy
    epe = jnp.sqrt(d2)
    epe_ref[...] = epe

    prob = prob_ref[...]
    cert = cert_ref[...]
    mask = (prob > 0.99).astype(jnp.float32)

    cs2 = cs * cs
    if alpha == 1.0:
        # cs * sqrt((epe/cs)^2 + 1) == sqrt(epe^2 + cs^2)  -- no divide, no pow
        reg = jnp.sqrt(d2 + cs2)
    elif alpha == 2.0:
        reg = d2 + cs2
    else:
        reg = (cs ** alpha) * (d2 / cs2 + 1.0) ** (alpha * 0.5)

    bce = jnp.maximum(cert, 0.0) - cert * prob + jnp.log(1.0 + jnp.exp(-jnp.abs(cert)))

    p_reg = jnp.sum(reg * mask, axis=0, keepdims=True)   # (1, 128) sublane sums
    p_cnt = jnp.sum(mask, axis=0, keepdims=True)
    p_bce = jnp.sum(bce, axis=0, keepdims=True)
    stats_ref[0] = jnp.concatenate(
        [p_reg, p_cnt, p_bce, jnp.zeros((5, 128), jnp.float32)], axis=0)


def _reg_stats(x2x, x2y, fx, fy, prob, cert, *, cs, alpha):
    N = x2x.shape[0]
    LANES = 128
    MAX_ROWS = 512                      # 512x128 f32 = 256 KiB per input block
    Np = _round_up(N, LANES)
    R = Np // LANES
    tile_r = min(R, MAX_ROWS)
    if R % tile_r:
        R = _round_up(R, tile_r)
        Np = R * LANES
    n_blk = R // tile_r
    n_pad = Np - N

    def prep(v):
        v = v.astype(jnp.float32)
        if n_pad:
            v = jnp.pad(v, (0, n_pad))
        return v.reshape(R, LANES)

    blk = pl.BlockSpec((tile_r, LANES), lambda i: (i, 0))
    kern = functools.partial(_reg_stats_kernel, cs=cs, alpha=alpha)
    stats, epe = pl.pallas_call(
        kern,
        out_shape=(jax.ShapeDtypeStruct((n_blk, 8, 128), jnp.float32),
                   jax.ShapeDtypeStruct((R, LANES), jnp.float32)),
        grid=(n_blk,),
        in_specs=[blk] * 6,
        out_specs=(pl.BlockSpec((1, 8, 128), lambda i: (i, 0, 0)), blk),
        compiler_params=pltpu.CompilerParams(
            dimension_semantics=("parallel",),
            vmem_limit_bytes=_VMEM_LIMIT),
    )(prep(x2x), prep(x2y), prep(fx), prep(fy), prep(prob), prep(cert))
    return stats, epe.reshape(Np)[:N], n_pad


# ----------------------------------------------------------------------------
# Plain-JAX glue reproducing RobustLosses semantics
# ----------------------------------------------------------------------------
def _make_grid(C):
    cls_res = round(math.sqrt(C))
    a = jnp.linspace(-1.0 + 1.0 / cls_res, 1.0 - 1.0 / cls_res, cls_res,
                     dtype=jnp.float32)
    gy, gx = jnp.meshgrid(a, a, indexing="ij")   # matches torch.meshgrid 'ij'
    # torch: stack((G[1], G[0]), -1) -> (x, y)
    return gx.reshape(C, 1), gy.reshape(C, 1)


def _interpolate_nearest_exact(x, size):
    # x: (B, H, W) -> (B, h, w), matches F.interpolate(mode='nearest-exact')
    B, H, W = x.shape
    h, w = size
    ri = jnp.clip(jnp.floor((jnp.arange(h) + 0.5) * (H / h)).astype(jnp.int32), 0, H - 1)
    ci = jnp.clip(jnp.floor((jnp.arange(w) + 0.5) * (W / w)).astype(jnp.int32), 0, W - 1)
    return x[:, ri][:, :, ci]


class RobustLossesPallas:
    def __init__(self, robust=False, center_coords=False, scale_normalize=False,
                 ce_weight=0.01, local_loss=True, local_dist=None,
                 local_largest_scale=8, smooth_mask=False, mask_depth_loss=False,
                 relative_depth_error_threshold=0.05, alpha=1.0, c=0.001,
                 ignore_empty_in_sparse_match_spv=False):
        self.ce_weight = ce_weight
        self.local_dist = local_dist if local_dist is not None else {}
        self.local_largest_scale = local_largest_scale
        self.alpha = alpha
        self.c = c
        # TODO(synk): ignore_empty_in_sparse_match_spv / gt_match_b_mask branch,
        # delta_cls path, gm_flow path and the scale==1 pck_05 metric are not
        # exercised by the synthetic batch and are not implemented.
        self.ignore_empty_in_sparse_match_spv = ignore_empty_in_sparse_match_spv

    # ---- gm_cls_loss (certainty_loss, cls_loss) ----
    def gm_cls_loss(self, x2, prob, scale_gm_cls, gm_certainty):
        B, C, H, W = scale_gm_cls.shape
        HW = H * W
        tn = min(2048, _round_up(HW, 128))          # logits block = C*tn*4 bytes
        HWp = _round_up(HW, tn)
        n_tiles = HWp // tn
        n_pad = HWp - HW

        gx, gy = _make_grid(C)
        logits = scale_gm_cls.reshape(B, C, HW).astype(jnp.float32)   # no transpose
        x2x = x2[..., 0].reshape(B, HW).astype(jnp.float32)
        x2y = x2[..., 1].reshape(B, HW).astype(jnp.float32)
        probf = prob.reshape(B, HW).astype(jnp.float32)
        certf = gm_certainty[:, 0].reshape(B, HW).astype(jnp.float32)
        scalars = jnp.stack([x2x, x2y, probf, certf], axis=1)         # (B, 4, HW)

        logits = _pad_last(logits, HWp)
        scalars = _pad_last(scalars, HWp)

        stats = _gm_stats(gx, gy, scalars, logits, tn=tn, n_tiles=n_tiles)
        sums = jnp.sum(stats, axis=(0, 2))            # (8,)
        sum_cls, cnt_mask, sum_bce = sums[0], sums[1], sums[2]
        # padded pixels contribute exactly log(2) each to the BCE sum
        sum_bce = sum_bce - jnp.float32(B * n_pad * _LN2)
        cert_mean = sum_bce / jnp.float32(B * HW)
        # `if not torch.any(cls_loss): cls_loss = certainty_loss * 0.0`
        cls_mean = jnp.where(cnt_mask > 0, sum_cls / jnp.maximum(cnt_mask, 1.0), 0.0)
        return cert_mean, cls_mean

    # ---- regression_loss (certainty_loss, regression_loss, epe) ----
    def regression_loss(self, x2, prob, flow, certainty, scale):
        B, _, H, W = flow.shape
        N = B * H * W
        x2x = x2[..., 0].reshape(N)
        x2y = x2[..., 1].reshape(N)
        fx = flow[:, 0].reshape(N)
        fy = flow[:, 1].reshape(N)
        probf = prob.reshape(N)
        certf = certainty[:, 0].reshape(N)
        cs = self.c * scale
        stats, epe, n_pad = _reg_stats(x2x, x2y, fx, fy, probf, certf,
                                       cs=float(cs), alpha=float(self.alpha))
        sums = jnp.sum(stats, axis=(0, 2))            # (8,)
        sum_reg, cnt_mask, sum_bce = sums[0], sums[1], sums[2]
        sum_bce = sum_bce - jnp.float32(n_pad * _LN2)
        cert_mean = sum_bce / jnp.float32(N)
        # robust term is strictly positive, so torch.any(reg_loss) == (cnt_mask > 0)
        reg_mean = jnp.where(cnt_mask > 0, sum_reg / jnp.maximum(cnt_mask, 1.0), 0.0)
        return cert_mean, reg_mean, epe.reshape(B, H, W)

    def forward(self, batch):
        # TODO(synk): the gm-cls and regression kernels could be fused at scales
        # where both run (they share x2 / prob); kept separate since gm only runs
        # at the coarsest (tiny-N) scale.
        corresps = batch["corresps"]
        scales = list(corresps.keys())
        tot_loss = jnp.float32(0.0)
        scale_weights = {1: 1, 2: 1, 4: 1, 8: 1, 16: 1}
        prev_epe = None
        for scale in scales:
            sc = corresps[scale]
            certainty = sc["certainty"]
            flow = sc["flow"]
            gm_cls = sc.get("gm_cls")
            gm_certainty = sc.get("gm_certainty")
            h, w = flow.shape[-2:]
            x2 = batch["gt"][scale]["gt_warp"].astype(jnp.float32)
            prob = batch["gt"][scale]["gt_prob"]
            if self.local_largest_scale >= scale:
                thresh = 2.0 / 512.0 * (self.local_dist[scale] * scale)
                pe = _interpolate_nearest_exact(prev_epe, (h, w))
                prob = prob * (pe < thresh).astype(prob.dtype)
            if gm_cls is not None:
                gm_cert_l, gm_cls_l = self.gm_cls_loss(x2, prob, gm_cls, gm_certainty)
                gm_loss = self.ce_weight * gm_cert_l + gm_cls_l
                tot_loss = tot_loss + scale_weights[scale] * gm_loss
            # delta_cls is None in the synthetic batch -> delta regression path
            d_cert, d_reg, epe = self.regression_loss(x2, prob, flow, certainty, scale)
            reg_loss = self.ce_weight * d_cert + d_reg
            tot_loss = tot_loss + scale_weights[scale] * reg_loss
            prev_epe = epe
        batch["loss"] = tot_loss
        batch["loss_scalars"] = {"loss": tot_loss}
        return batch


# ----------------------------------------------------------------------------
if __name__ == "__main__":
    key = jax.random.PRNGKey(0)
    B = 2
    cls_res = 8
    C = cls_res * cls_res                     # 64 classes
    shapes = {16: (8, 8), 2: (16, 16)}        # coarse (gm) and fine (regression) scales

    ks = iter(jax.random.split(key, 16))
    batch = {"corresps": {}, "gt": {}}

    # scale 16: gm classification + regression
    H, W = shapes[16]
    batch["corresps"][16] = {
        "gm_cls": jax.random.normal(next(ks), (B, C, H, W), jnp.float32),
        "gm_certainty": jax.random.normal(next(ks), (B, 1, H, W), jnp.float32),
        "certainty": jax.random.normal(next(ks), (B, 1, H, W), jnp.float32),
        "flow": jax.random.uniform(next(ks), (B, 2, H, W), jnp.float32, -1.0, 1.0),
    }
    batch["gt"][16] = {
        "gt_warp": jax.random.uniform(next(ks), (B, H, W, 2), jnp.float32, -1.0, 1.0),
        "gt_prob": (jax.random.uniform(next(ks), (B, H, W)) > 0.5).astype(jnp.float32),
    }

    # scale 2: regression only (local-loss masking via prev_epe is exercised)
    H, W = shapes[2]
    batch["corresps"][2] = {
        "certainty": jax.random.normal(next(ks), (B, 1, H, W), jnp.float32),
        "flow": jax.random.uniform(next(ks), (B, 2, H, W), jnp.float32, -1.0, 1.0),
    }
    batch["gt"][2] = {
        "gt_warp": jax.random.uniform(next(ks), (B, H, W, 2), jnp.float32, -1.0, 1.0),
        "gt_prob": (jax.random.uniform(next(ks), (B, H, W)) > 0.5).astype(jnp.float32),
    }

    loss_mod = RobustLossesPallas(ce_weight=0.01, local_dist={16: 4.0, 2: 4.0},
                                  local_largest_scale=8, alpha=1.0, c=0.001)
    out_batch = loss_mod.forward(batch)
    loss = jax.block_until_ready(out_batch["loss"])
    assert bool(jnp.isfinite(loss))
    print("KERNEL_OK")
</pallas_src>

<mosaic_0001>
module attributes {stable_mosaic.version = 11 : i64} {
  func.func @_gm_stats_kernel(%arg0: i32, %arg1: i32, %arg2: memref<64x1xf32, #tpu.memory_space<vmem>>, %arg3: memref<64x1xf32, #tpu.memory_space<vmem>>, %arg4: memref<1x4x128xf32, #tpu.memory_space<vmem>>, %arg5: memref<1x64x128xf32, #tpu.memory_space<vmem>>, %arg6: memref<1x8x128xf32, #tpu.memory_space<vmem>>) attributes {dimension_semantics = [#tpu.dimension_semantics<parallel>, #tpu.dimension_semantics<parallel>], iteration_bounds = array<i64: 2, 1>, scalar_prefetch = 0 : i64, scratch_operands = 0 : i64, tpu.core_type = #tpu.core_type<tc>, window_params = [{pipeline_mode = #tpu.pipeline_mode<synchronous>, transform_indices = @transform_0, window_bounds = array<i64: 64, 1>}, {pipeline_mode = #tpu.pipeline_mode<synchronous>, transform_indices = @transform_1, window_bounds = array<i64: 64, 1>}, {transform_indices = @transform_2, window_bounds = array<i64: 1, 4, 128>}, {transform_indices = @transform_3, window_bounds = array<i64: 1, 64, 128>}, {transform_indices = @transform_4, window_bounds = array<i64: 1, 8, 128>}]} {
    %c0 = arith.constant 0 : index
    %c0_0 = arith.constant 0 : index
    %0 = vector.load %arg2[%c0, %c0_0] : memref<64x1xf32, #tpu.memory_space<vmem>>, vector<64x1xf32>
    %c0_1 = arith.constant 0 : index
    %c0_2 = arith.constant 0 : index
    %1 = vector.load %arg3[%c0_1, %c0_2] : memref<64x1xf32, #tpu.memory_space<vmem>>, vector<64x1xf32>
    %c0_3 = arith.constant 0 : index
    %c0_4 = arith.constant 0 : index
    %c0_5 = arith.constant 0 : index
    %2 = vector.load %arg4[%c0_3, %c0_4, %c0_5] : memref<1x4x128xf32, #tpu.memory_space<vmem>>, vector<1x4x128xf32>
    %3 = vector.shape_cast %2 : vector<1x4x128xf32> to vector<4x128xf32>
    %c0_6 = arith.constant 0 : index
    %c0_7 = arith.constant 0 : index
    %c0_8 = arith.constant 0 : index
    %4 = vector.load %arg5[%c0_6, %c0_7, %c0_8] : memref<1x64x128xf32, #tpu.memory_space<vmem>>, vector<1x64x128xf32>
    %5 = vector.shape_cast %4 : vector<1x64x128xf32> to vector<64x128xf32>
    %6 = vector.extract_strided_slice %3 {offsets = [0, 0], sizes = [1, 128], strides = [1, 1]} : vector<4x128xf32> to vector<1x128xf32>
    %7 = vector.extract_strided_slice %3 {offsets = [1, 0], sizes = [1, 128], strides = [1, 1]} : vector<4x128xf32> to vector<1x128xf32>
    %8 = vector.extract_strided_slice %3 {offsets = [2, 0], sizes = [1, 128], strides = [1, 1]} : vector<4x128xf32> to vector<1x128xf32>
    %9 = vector.extract_strided_slice %3 {offsets = [3, 0], sizes = [1, 128], strides = [1, 1]} : vector<4x128xf32> to vector<1x128xf32>
    %10 = vector.broadcast %0 : vector<64x1xf32> to vector<64x128xf32>
    %11 = vector.broadcast %6 : vector<1x128xf32> to vector<64x128xf32>
    %12 = arith.subf %10, %11 : vector<64x128xf32>
    %13 = vector.broadcast %1 : vector<64x1xf32> to vector<64x128xf32>
    %14 = vector.broadcast %7 : vector<1x128xf32> to vector<64x128xf32>
    %15 = arith.subf %13, %14 : vector<64x128xf32>
    %16 = arith.mulf %12, %12 : vector<64x128xf32>
    %17 = arith.mulf %15, %15 : vector<64x128xf32>
    %18 = arith.addf %16, %17 : vector<64x128xf32>
    %19 = tpu.iota {dimensions = array<i32: 0>} : vector<64x128xi32>
    %cst = arith.constant dense<0x7F800000> : vector<128xf32>
    %20 = vector.multi_reduction <minimumf>, %18, %cst [0] : vector<64x128xf32> to vector<128xf32>
    %21 = vector.shape_cast %20 : vector<128xf32> to vector<1x128xf32>
    %22 = vector.broadcast %21 : vector<1x128xf32> to vector<64x128xf32>
    %23 = arith.cmpf ole, %18, %22 : vector<64x128xf32>
    %c64_i32 = arith.constant 64 : i32
    %24 = vector.broadcast %c64_i32 : i32 to vector<64x128xi32>
    %25 = arith.select %23, %19, %24 : vector<64x128xi1>, vector<64x128xi32>
    %cst_9 = arith.constant dense<2147483647> : vector<128xi32>
    %26 = vector.multi_reduction <minsi>, %25, %cst_9 [0] : vector<64x128xi32> to vector<128xi32>
    %27 = vector.shape_cast %26 : vector<128xi32> to vector<1x128xi32>
    %28 = vector.broadcast %27 : vector<1x128xi32> to vector<64x128xi32>
    %29 = arith.cmpi eq, %19, %28 : vector<64x128xi32>
    %30 = arith.extui %29 : vector<64x128xi1> to vector<64x128xi32>
    %31 = arith.sitofp %30 : vector<64x128xi32> to vector<64x128xf32>
    %cst_10 = arith.constant dense<0xFF800000> : vector<128xf32>
    %32 = vector.multi_reduction <maximumf>, %5, %cst_10 [0] : vector<64x128xf32> to vector<128xf32>
    %33 = vector.shape_cast %32 : vector<128xf32> to vector<1x128xf32>
    %34 = vector.broadcast %33 : vector<1x128xf32> to vector<64x128xf32>
    %35 = arith.subf %5, %34 : vector<64x128xf32>
    %36 = math.exp %35 : vector<64x128xf32>
    %cst_11 = arith.constant dense<0.000000e+00> : vector<128xf32>
    %37 = vector.multi_reduction <add>, %36, %cst_11 [0] : vector<64x128xf32> to vector<128xf32>
    %38 = vector.shape_cast %37 : vector<128xf32> to vector<1x128xf32>
    %39 = math.log %38 : vector<1x128xf32>
    %40 = arith.addf %33, %39 : vector<1x128xf32>
    %41 = arith.mulf %5, %31 : vector<64x128xf32>
    %cst_12 = arith.constant dense<0.000000e+00> : vector<128xf32>
    %42 = vector.multi_reduction <add>, %41, %cst_12 [0] : vector<64x128xf32> to vector<128xf32>
    %43 = vector.shape_cast %42 : vector<128xf32> to vector<1x128xf32>
    %44 = arith.subf %40, %43 : vector<1x128xf32>
    %cst_13 = arith.constant 9.900000e-01 : f32
    %45 = vector.broadcast %cst_13 : f32 to vector<1x128xf32>
    %46 = arith.cmpf ogt, %8, %45 : vector<1x128xf32>
    %47 = arith.extui %46 : vector<1x128xi1> to vector<1x128xi32>
    %48 = arith.sitofp %47 : vector<1x128xi32> to vector<1x128xf32>
    %cst_14 = arith.constant 0.000000e+00 : f32
    %49 = vector.broadcast %cst_14 : f32 to vector<1x128xf32>
    %50 = arith.maximumf %9, %49 : vector<1x128xf32>
    %51 = arith.mulf %9, %8 : vector<1x128xf32>
    %52 = arith.subf %50, %51 : vector<1x128xf32>
    %53 = math.absf %9 : vector<1x128xf32>
    %cst_15 = arith.constant 0.000000e+00 : f32
    %54 = vector.broadcast %cst_15 : f32 to vector<1x128xf32>
    %55 = arith.subf %54, %53 : vector<1x128xf32>
    %56 = math.exp %55 : vector<1x128xf32>
    %cst_16 = arith.constant 1.000000e+00 : f32
    %57 = vector.broadcast %cst_16 : f32 to vector<1x128xf32>
    %58 = arith.addf %57, %56 : vector<1x128xf32>
    %59 = math.log %58 : vector<1x128xf32>
    %60 = arith.addf %52, %59 : vector<1x128xf32>
    %61 = arith.mulf %44, %48 : vector<1x128xf32>
    %62 = vector.shape_cast %61 : vector<1x128xf32> to vector<1x1x128xf32>
    %cst_17 = arith.constant dense<0.000000e+00> : vector<1xf32>
    %63 = vector.multi_reduction <add>, %62, %cst_17 [1, 2] : vector<1x1x128xf32> to vector<1xf32>
    %64 = vector.shape_cast %63 : vector<1xf32> to vector<1x1x1xf32>
    %65 = vector.extract %64[0, 0, 0] : f32 from vector<1x1x1xf32>
    %66 = vector.shape_cast %48 : vector<1x128xf32> to vector<1x1x128xf32>
    %cst_18 = arith.constant dense<0.000000e+00> : vector<1xf32>
    %67 = vector.multi_reduction <add>, %66, %cst_18 [1, 2] : vector<1x1x128xf32> to vector<1xf32>
    %68 = vector.shape_cast %67 : vector<1xf32> to vector<1x1x1xf32>
    %69 = vector.extract %68[0, 0, 0] : f32 from vector<1x1x1xf32>
    %70 = vector.shape_cast %60 : vector<1x128xf32> to vector<1x1x128xf32>
    %cst_19 = arith.constant dense<0.000000e+00> : vector<1xf32>
    %71 = vector.multi_reduction <add>, %70, %cst_19 [1, 2] : vector<1x1x128xf32> to vector<1xf32>
    %72 = vector.shape_cast %71 : vector<1xf32> to vector<1x1x1xf32>
    %73 = vector.extract %72[0, 0, 0] : f32 from vector<1x1x1xf32>
    %74 = tpu.iota {dimensions = array<i32: 1>} : vector<1x128xi32>
    %c0_i32 = arith.constant 0 : i32
    %75 = vector.broadcast %c0_i32 : i32 to vector<1x128xi32>
    %76 = arith.cmpi eq, %74, %75 : vector<1x128xi32>
    %cst_20 = arith.constant 0.000000e+00 : f32
    %77 = vector.broadcast %65 : f32 to vector<1x128xf32>
    %78 = vector.broadcast %cst_20 : f32 to vector<1x128xf32>
    %79 = arith.select %76, %77, %78 : vector<1x128xi1>, vector<1x128xf32>
    %c1_i32 = arith.constant 1 : i32
    %80 = vector.broadcast %c1_i32 : i32 to vector<1x128xi32>
    %81 = arith.cmpi eq, %74, %80 : vector<1x128xi32>
    %cst_21 = arith.constant 0.000000e+00 : f32
    %82 = vector.broadcast %69 : f32 to vector<1x128xf32>
    %83 = vector.broadcast %cst_21 : f32 to vector<1x128xf32>
    %84 = arith.select %81, %82, %83 : vector<1x128xi1>, vector<1x128xf32>
    %85 = arith.addf %79, %84 : vector<1x128xf32>
    %c2_i32 = arith.constant 2 : i32
    %86 = vector.broadcast %c2_i32 : i32 to vector<1x128xi32>
    %87 = arith.cmpi eq, %74, %86 : vector<1x128xi32>
    %cst_22 = arith.constant 0.000000e+00 : f32
    %88 = vector.broadcast %73 : f32 to vector<1x128xf32>
    %89 = vector.broadcast %cst_22 : f32 to vector<1x128xf32>
    %90 = arith.select %87, %88, %89 : vector<1x128xi1>, vector<1x128xf32>
    %91 = arith.addf %85, %90 : vector<1x128xf32>
    %cst_23 = arith.constant 0.000000e+00 : f32
    %92 = vector.broadcast %cst_23 : f32 to vector<7x128xf32>
    %93 = tpu.concatenate %91, %92 in 0 : vector<1x128xf32>, vector<7x128xf32> -> vector<8x128xf32>
    %c0_24 = arith.constant 0 : index
    %c0_25 = arith.constant 0 : index
    %c0_26 = arith.constant 0 : index
    %94 = vector.load %arg6[%c0_24, %c0_25, %c0_26] : memref<1x8x128xf32, #tpu.memory_space<vmem>>, vector<1x8x128xf32>
    %95 = vector.shape_cast %94 : vector<1x8x128xf32> to vector<8x128xf32>
    %96 = vector.shape_cast %93 : vector<8x128xf32> to vector<1x8x128xf32>
    tpu.vector_store %arg6[%c0_24, %c0_25, %c0_26], %96 {strides = array<i32>} : memref<1x8x128xf32, #tpu.memory_space<vmem>>, vector<1x8x128xf32>,
    return
  }
  func.func @transform_0(%arg0: i32, %arg1: i32) -> (i32, i32) {
    %c0_i32 = arith.constant 0 : i32
    %c0_i32_0 = arith.constant 0 : i32
    %c0_i32_1 = arith.constant 0 : i32
    return %c0_i32, %c0_i32_0 : i32, i32
  }
  func.func @transform_1(%arg0: i32, %arg1: i32) -> (i32, i32) {
    %c0_i32 = arith.constant 0 : i32
    %c0_i32_0 = arith.constant 0 : i32
    %c0_i32_1 = arith.constant 0 : i32
    return %c0_i32, %c0_i32_0 : i32, i32
  }
  func.func @transform_2(%arg0: i32, %arg1: i32) -> (i32, i32, i32) {
    %c0_i32 = arith.constant 0 : i32
    %c0_i32_0 = arith.constant 0 : i32
    return %arg0, %c0_i32, %arg1 : i32, i32, i32
  }
  func.func @transform_3(%arg0: i32, %arg1: i32) -> (i32, i32, i32) {
    %c0_i32 = arith.constant 0 : i32
    %c0_i32_0 = arith.constant 0 : i32
    return %arg0, %c0_i32, %arg1 : i32, i32, i32
  }
  func.func @transform_4(%arg0: i32, %arg1: i32) -> (i32, i32, i32) {
    %c1_i32 = arith.constant 1 : i32
    %0 = arith.muli %arg0, %c1_i32 : i32
    %1 = arith.addi %0, %arg1 : i32
    %c0_i32 = arith.constant 0 : i32
    %c0_i32_0 = arith.constant 0 : i32
    %c0_i32_1 = arith.constant 0 : i32
    return %1, %c0_i32, %c0_i32_0 : i32, i32, i32
  }
}

</mosaic_0001>

<llo_original>
// kernel: tpu_custom_call.1
$region0: #{tpu_custom_call.1}
  #allocation0 [shape = 'u32[]', space=smem, size = 0x4, offset = 0x4, fixed_abs, tag = 'smem constant byte address 0x4 - core index']
  #allocation1 [shape = 'u32[144,128]{1,0:T(1,128)}', space=vmem, size = 0x12000, scoped, tag = 'internal scratch']
  %s0 = inlined_call_operand.vmem [shape: f32[64,1], index: 0, kind: input, shape index: {}]
  %s1 = inlined_call_operand.vmem [shape: f32[64,1], index: 1, kind: input, shape index: {}]
  %s2 = inlined_call_operand.vmem [shape: f32[2,4,128], index: 2, kind: input, shape index: {}]
  %s3 = inlined_call_operand.vmem [shape: f32[2,64,128], index: 3, kind: input, shape index: {}]
  %s4 = inlined_call_operand.hbm [shape: f32[2,8,128], index: 4, kind: output, shape index: {}]
  %s5 = sld [smem:[#allocation0]]
  $region49: #{tpu_custom_call.1} parent=0
    _
  %s7 = ssub.s32 1, %s5
  %s8 = scalar_select 0, %s7, %s5
  $region1: #{tpu_custom_call.1} parent=0
    #allocation2 [shape = 'u8[8192]{0}', space=vmem, size = 0x2000, scoped, tag = 'output window, operand 0']
    #allocation3 [shape = 's32[2]{0}', space=sflag, size = 0x8, scoped, tag = 'scoped memory for tpu_custom_call.1']
    %9 = vsyncpa [#allocation3], 0
    %s10 = scalar_lea.sflag [#allocation3], 1
    %11 = vsyncpa %s10, 0
    loop: start=0, step=1, limit=4
    $region2: #{tpu_custom_call.1} parent=1 // loop_pre_header
      _
    $region3: #{tpu_custom_call.1} parent=1 // loop_header
      %s13 = sphi 0, %s17
      %p14 = scmp.ge.s32.totalorder %s13, 4
      %s20 = sphi 0, %s32
      %s21 = sphi 0, %s28
      %s22 = sphi 0, %s20
      %s23 = sphi 0, %s21
      %s24 = sphi 0, %s22
      %s25 = sphi 0, %s23
      %s33 = sphi 0, %s33
      %s35 = sphi 0, %s33
      %s36 = sphi 0, %s35
      %s50 = sphi 0, %s36
      %s54 = sphi 0, %s54
      %s56 = sphi 0, %s54
      %s57 = sphi 0, %s56
      %s71 = sphi 0, %s57
      %s79 = sphi 0, %s81
      %s82 = sphi 0, %s79
      %s83 = sphi 0, %s82
      %s99 = sphi 0, %s83
      %s107 = sphi 0, %s109
      %s110 = sphi 0, %s107
      %s111 = sphi 0, %s110
      %s127 = sphi 0, %s111
      %s135 = sphi 0, %s137
      %s138 = sphi 0, %s135
      %s139 = sphi 0, %s138
      %s155 = sphi 0, %s139
    $region4: #{tpu_custom_call.1} parent=1 // loop_header_branch
      %16 = sbr.rel (%p14) target = $region8
    $region5: #{tpu_custom_call.1} parent=1 // loop_body
      %s18 = ssub.s32 %s13, 1
      %s19 = ssub.s32 %s13, 2
      %s26 = sadd.s32 1, %s21
      %p27 = scmp.ge.s32.totalorder %s26, 1
      %s28 = scalar_select %p27, 0, %s26
      %s29 = sadd.s32 1, %s20
      %s30 = scalar_select %p27, %s29, %s20
      %p31 = scmp.ge.s32.totalorder %s30, 2
      %s32 = scalar_select %p31, 0, %s30
      %s34 = sadd.s32 %s33, 1
      %p37 = scmp.eq.s32.totalorder %s13, 1
      %p38 = scmp.ne.s32.totalorder %s33, %s35
      %p39 = scmp.eq.s32.totalorder %s13, 0
      %p40 = por %p38, %p39
      %p41 = scmp.ne.s32.totalorder %s33, %s35
      %p42 = scmp.eq.s32.totalorder %s18, 1
      %p43 = por %p41, %p42
      %p44 = scmp.ne.s32.totalorder %s35, %s36
      %p45 = scmp.eq.s32.totalorder %s18, 0
      %p46 = por %p44, %p45
      %p47 = scmp.ne.s32.totalorder %s35, %s36
      %p48 = scmp.eq.s32.totalorder %s19, 1
      %p49 = por %p47, %p48
      %p51 = scmp.ne.s32.totalorder %s36, %s50
      %p52 = scmp.eq.s32.totalorder %s19, 0
      %p53 = por %p51, %p52
      %s55 = sadd.s32 %s54, 1
      %p58 = scmp.eq.s32.totalorder %s13, 1
      %p59 = scmp.ne.s32.totalorder %s54, %s56
      %p60 = scmp.eq.s32.totalorder %s13, 0
      %p61 = por %p59, %p60
      %p62 = scmp.ne.s32.totalorder %s54, %s56
      %p63 = scmp.eq.s32.totalorder %s18, 1
      %p64 = por %p62, %p63
      %p65 = scmp.ne.s32.totalorder %s56, %s57
      %p66 = scmp.eq.s32.totalorder %s18, 0
      %p67 = por %p65, %p66
      %p68 = scmp.ne.s32.totalorder %s56, %s57
      %p69 = scmp.eq.s32.totalorder %s19, 1
      %p70 = por %p68, %p69
      %p72 = scmp.ne.s32.totalorder %s57, %s71
      %p73 = scmp.eq.s32.totalorder %s19, 0
      %p74 = por %p72, %p73
      %s75 = ssub.s32 %s20, %s32
      %s76 = ssub.s32 %s21, %s28
      %s77 = sor.u32 %s75, %s76
      %p78 = scmp.eq.s32.totalorder %s77, 0
      %s80 = sadd.s32 %s79, 1
      %s81 = scalar_select %p78, %s79, %s80
      %p84 = pneg %p78
      %p85 = scmp.eq.s32.totalorder %s13, 1
      %p86 = por %p84, %p85
      %p87 = scmp.ne.s32.totalorder %s79, %s82
      %p88 = scmp.eq.s32.totalorder %s13, 0
      %p89 = por %p87, %p88
      %p90 = scmp.ne.s32.totalorder %s79, %s82
      %p91 = scmp.eq.s32.totalorder %s18, 1
      %p92 = por %p90, %p91
      %p93 = scmp.ne.s32.totalorder %s82, %s83
      %p94 = scmp.eq.s32.totalorder %s18, 0
      %p95 = por %p93, %p94
      %p96 = scmp.ne.s32.totalorder %s82, %s83
      %p97 = scmp.eq.s32.totalorder %s19, 1
      %p98 = por %p96, %p97
      %p100 = scmp.ne.s32.totalorder %s83, %s99
      %p101 = scmp.eq.s32.totalorder %s19, 0
      %p102 = por %p100, %p101
      %s103 = ssub.s32 %s20, %s32
      %s104 = ssub.s32 %s21, %s28
      %s105 = sor.u32 %s103, %s104
      %p106 = scmp.eq.s32.totalorder %s105, 0
      %s108 = sadd.s32 %s107, 1
      %s109 = scalar_select %p106, %s107, %s108
      %p112 = pneg %p106
      %p113 = scmp.eq.s32.totalorder %s13, 1
      %p114 = por %p112, %p113
      %p115 = scmp.ne.s32.totalorder %s107, %s110
      %p116 = scmp.eq.s32.totalorder %s13, 0
      %p117 = por %p115, %p116
      %p118 = scmp.ne.s32.totalorder %s107, %s110
      %p119 = scmp.eq.s32.totalorder %s18, 1
      %p120 = por %p118, %p119
      %p121 = scmp.ne.s32.totalorder %s110, %s111
      %p122 = scmp.eq.s32.totalorder %s18, 0
      %p123 = por %p121, %p122
      %p124 = scmp.ne.s32.totalorder %s110, %s111
      %p125 = scmp.eq.s32.totalorder %s19, 1
      %p126 = por %p124, %p125
      %p128 = scmp.ne.s32.totalorder %s111, %s127
      %p129 = scmp.eq.s32.totalorder %s19, 0
      %p130 = por %p128, %p129
      %s131 = sadd.s32 %s20, %s21
      %s132 = sadd.s32 %s32, %s28
      %s133 = ssub.s32 %s131, %s132
      %p134 = scmp.eq.s32.totalorder %s133, 0
      %s136 = sadd.s32 %s135, 1
      %s137 = scalar_select %p134, %s135, %s136
      %p140 = pneg %p134
      %p141 = scmp.eq.s32.totalorder %s13, 1
      %p142 = por %p140, %p141
      %p143 = scmp.ne.s32.totalorder %s135, %s138
      %p144 = scmp.eq.s32.totalorder %s13, 0
      %p145 = por %p143, %p144
      %p146 = scmp.ne.s32.totalorder %s135, %s138
      %p147 = scmp.eq.s32.totalorder %s18, 1
      %p148 = por %p146, %p147
      %p149 = scmp.ne.s32.totalorder %s138, %s139
      %p150 = scmp.eq.s32.totalorder %s18, 0
      %p151 = por %p149, %p150
      %p152 = scmp.ne.s32.totalorder %s138, %s139
      %p153 = scmp.eq.s32.totalorder %s19, 1
      %p154 = por %p152, %p153
      %p156 = scmp.ne.s32.totalorder %s139, %s155
      %p157 = scmp.eq.s32.totalorder %s19, 0
      %p158 = por %p156, %p157
      %p159 = scmp.le.s32.totalorder 1, %s13
      %p160 = scmp.lt.s32.totalorder %s13, 3
      %p161 = pnand %p159, %p160
      %p162 = pneg %p161
      // Predicated region
      $region9: #{tpu_custom_call.1} parent=5 // pred_check
        _
      $region10: #{tpu_custom_call.1} parent=5 // pred_check_branch
        %164 = sbr.rel (%p161) target = $region12
      $region11: #{tpu_custom_call.1} parent=5 // pred_region
        %s165 = ssub.s32 %s13, 1
        // Predicated region
        $region13: #{tpu_custom_call.1} parent=11 // pred_check
          %p166 = pneg %p46
        $region14: #{tpu_custom_call.1} parent=11 // pred_check_branch
          %168 = sbr.rel (%p166) target = $region16
        $region15: #{tpu_custom_call.1} parent=11 // pred_region
          _
        $region16: #{tpu_custom_call.1} parent=11 // pred_fallthru
          _
        // Predicated region
        $region17: #{tpu_custom_call.1} parent=11 // pred_check
          %p169 = pneg %p67
        $region18: #{tpu_custom_call.1} parent=11 // pred_check_branch
          %171 = sbr.rel (%p169) target = $region20
        $region19: #{tpu_custom_call.1} parent=11 // pred_region
          _
        $region20: #{tpu_custom_call.1} parent=11 // pred_fallthru
          _
      $region12: #{tpu_custom_call.1} parent=5 // pred_fallthru
        _
      %p172 = scmp.lt.s32.totalorder %s13, 2
      // Predicated region
      $region21: #{tpu_custom_call.1} parent=5 // pred_check
        %p173 = pneg %p172
      $region22: #{tpu_custom_call.1} parent=5 // pred_check_branch
        %175 = sbr.rel (%p173) target = $region24
      $region23: #{tpu_custom_call.1} parent=5 // pred_region
        // Predicated region
        $region25: #{tpu_custom_call.1} parent=23 // pred_check
          %p176 = pneg %p89
        $region26: #{tpu_custom_call.1} parent=23 // pred_check_branch
          %178 = sbr.rel (%p176) target = $region28
        $region27: #{tpu_custom_call.1} parent=23 // pred_region
          %p179 = scmp.lt.s32.totalorder %s20, 1
          %s180 = scalar_select %p179, %s20, 1
          %p181 = scmp.lt.s32.totalorder %s21, 0
          %s182 = scalar_select %p181, %s21, 0
          %s183 = sadd.s32 %s182, %s180
          %s184 = smul.addr %s183, 4
          %s185 = scalar_lea.vmem %s2, %s184
        $region28: #{tpu_custom_call.1} parent=23 // pred_fallthru
          _
        // Predicated region
        $region29: #{tpu_custom_call.1} parent=23 // pred_check
          %p186 = pneg %p117
        $region30: #{tpu_custom_call.1} parent=23 // pred_check_branch
          %188 = sbr.rel (%p186) target = $region32
        $region31: #{tpu_custom_call.1} parent=23 // pred_region
          %p189 = scmp.lt.s32.totalorder %s20, 1
          %s190 = scalar_select %p189, %s20, 1
          %p191 = scmp.lt.s32.totalorder %s21, 0
          %s192 = scalar_select %p191, %s21, 0
          %s193 = smul.addr %s190, 8
          %s194 = sadd.s32 %s192, %s193
          %s195 = smul.addr %s194, 8
          %s196 = scalar_lea.vmem %s3, %s195
        $region32: #{tpu_custom_call.1} parent=23 // pred_fallthru
          _
      $region24: #{tpu_custom_call.1} parent=5 // pred_fallthru
        _
      %p197 = scmp.le.s32.totalorder 1, %s13
      %p198 = scmp.lt.s32.totalorder %s13, 3
      %p199 = pnand %p197, %p198
      %p200 = pneg %p199
      // Predicated region
      $region33: #{tpu_custom_call.1} parent=5 // pred_check
        _
      $region34: #{tpu_custom_call.1} parent=5 // pred_check_branch
        %202 = sbr.rel (%p199) target = $region36
      $region35: #{tpu_custom_call.1} parent=5 // pred_region
        %s203 = ssub.s32 %s13, 1
        %p204 = pneg %p46
        %p205 = pneg %p43
        %p206 = pneg %p67
        %p207 = pneg %p64
        %p208 = scmp.lt.s32.totalorder %s22, 1
        %s209 = scalar_select %p208, %s22, 1
        %p210 = scmp.lt.s32.totalorder %s23, 0
        %s211 = scalar_select %p210, %s23, 0
        %s212 = sadd.s32 %s211, %s209
        %s213 = smul.addr %s212, 4
        %s214 = scalar_lea.vmem %s2, %s213
        %p215 = pneg %p95
        %p216 = pneg %p92
        %p217 = scmp.lt.s32.totalorder %s22, 1
        %s218 = scalar_select %p217, %s22, 1
        %p219 = scmp.lt.s32.totalorder %s23, 0
        %s220 = scalar_select %p219, %s23, 0
        %s221 = smul.addr %s218, 8
        %s222 = sadd.s32 %s220, %s221
        %s223 = smul.addr %s222, 8
        %s224 = scalar_lea.vmem %s3, %s223
        %p225 = pneg %p123
        %p226 = pneg %p120
        %p227 = pneg %p151
        %p228 = pneg %p148
        %s229 = sand.u32 %s138, 1
        %s230 = scalar_lea.sflag [#allocation3], %s229
        %s231 = sand.u32 %s138, 1
        %s232 = smul.addr %s231, 8
        %s233 = scalar_lea.vmem [#allocation2], %s232
        %p234 = scmp.lt.s32.totalorder %s22, 1
        %s235 = scalar_select %p234, %s22, 1
        %p236 = scmp.lt.s32.totalorder %s23, 0
        %s237 = scalar_select %p236, %s23, 0
        %s238 = sadd.s32 %s237, %s235
        %s239 = smul.addr %s238, 4
        %s240 = scalar_lea.vmem %s2, %s239
        %p241 = scmp.lt.s32.totalorder %s22, 1
        %s242 = scalar_select %p241, %s22, 1
        %p243 = scmp.lt.s32.totalorder %s23, 0
        %s244 = scalar_select %p243, %s23, 0
        %s245 = smul.addr %s242, 8
        %s246 = sadd.s32 %s244, %s245
        %s247 = smul.addr %s246, 8
        %s248 = scalar_lea.vmem %s3, %s247
        %s249 = sadd.s32 %s22, %s23
        %v250 = vld [vmem:[%s0] sm:$0xff]
        %v251 = vld [vmem:[%s0 + $0x8] sm:$0xff]
        %v252 = vld [vmem:[%s0 + $0x10] sm:$0xff]
        %v253 = vld [vmem:[%s0 + $0x18] sm:$0xff]
        %v254 = vld [vmem:[%s0 + $0x20] sm:$0xff]
        %v255 = vld [vmem:[%s0 + $0x28] sm:$0xff]
        %v256 = vld [vmem:[%s0 + $0x30] sm:$0xff]
        %v257 = vld [vmem:[%s0 + $0x38] sm:$0xff]
        %v258 = vld [vmem:[%s1] sm:$0xff]
        %v259 = vld [vmem:[%s1 + $0x8] sm:$0xff]
        %v260 = vld [vmem:[%s1 + $0x10] sm:$0xff]
        %v261 = vld [vmem:[%s1 + $0x18] sm:$0xff]
        %v262 = vld [vmem:[%s1 + $0x20] sm:$0xff]
        %v263 = vld [vmem:[%s1 + $0x28] sm:$0xff]
        %v264 = vld [vmem:[%s1 + $0x30] sm:$0xff]
        %v265 = vld [vmem:[%s1 + $0x38] sm:$0xff]
        %v266 = vld [vmem:[%s240] sm:$0xf]
        %v267 = vld [vmem:[%s248] sm:$0xff]
        %v268 = vld [vmem:[%s248 + $0x8] sm:$0xff]
        %v269 = vld [vmem:[%s248 + $0x10] sm:$0xff]
        %v270 = vld [vmem:[%s248 + $0x18] sm:$0xff]
        %v271 = vld [vmem:[%s248 + $0x20] sm:$0xff]
        %v272 = vld [vmem:[%s248 + $0x28] sm:$0xff]
        %v273 = vld [vmem:[%s248 + $0x30] sm:$0xff]
        %v274 = vld [vmem:[%s248 + $0x38] sm:$0xff]
        %276 = vset.pattern.permute.xlu0 0
        %277 = vperm.xlu0 %276, %v250
        %v278 = vpop.permute.xlu0 %277
        %281 = vset.pattern.permute.xlu0 0
        %282 = vperm.xlu0 %281, %v251
        %v283 = vpop.permute.xlu0 %282
        %286 = vset.pattern.permute.xlu0 0
        %287 = vperm.xlu0 %286, %v252
        %v288 = vpop.permute.xlu0 %287
        %291 = vset.pattern.permute.xlu0 0
        %292 = vperm.xlu0 %291, %v253
        %v293 = vpop.permute.xlu0 %292
        %296 = vset.pattern.permute.xlu0 0
        %297 = vperm.xlu0 %296, %v254
        %v298 = vpop.permute.xlu0 %297
        %301 = vset.pattern.permute.xlu0 0
        %302 = vperm.xlu0 %301, %v255
        %v303 = vpop.permute.xlu0 %302
        %306 = vset.pattern.permute.xlu0 0
        %307 = vperm.xlu0 %306, %v256
        %v308 = vpop.permute.xlu0 %307
        %311 = vset.pattern.permute.xlu0 0
        %312 = vperm.xlu0 %311, %v257
        %v313 = vpop.permute.xlu0 %312
        %v315 = vlaneseq
        %v316 = vshrl.u32 %v315, 7
        %v317 = vsub.s32 0, %v316
        %v318 = vrot.slane %v266, %v317
        %v319 = vsub.f32 %v278, %v318
        %v320 = vsub.f32 %v283, %v318
        %v321 = vsub.f32 %v288, %v318
        %v322 = vsub.f32 %v293, %v318
        %v323 = vsub.f32 %v298, %v318
        %v324 = vsub.f32 %v303, %v318
        %v325 = vsub.f32 %v308, %v318
        %v326 = vsub.f32 %v313, %v318
        %328 = vset.pattern.permute.xlu0 0
        %329 = vperm.xlu0 %328, %v258
        %v330 = vpop.permute.xlu0 %329
        %333 = vset.pattern.permute.xlu0 0
        %334 = vperm.xlu0 %333, %v259
        %v335 = vpop.permute.xlu0 %334
        %338 = vset.pattern.permute.xlu0 0
        %339 = vperm.xlu0 %338, %v260
        %v340 = vpop.permute.xlu0 %339
        %343 = vset.pattern.permute.xlu0 0
        %344 = vperm.xlu0 %343, %v261
        %v345 = vpop.permute.xlu0 %344
        %348 = vset.pattern.permute.xlu0 0
        %349 = vperm.xlu0 %348, %v262
        %v350 = vpop.permute.xlu0 %349
        %353 = vset.pattern.permute.xlu0 0
        %354 = vperm.xlu0 %353, %v263
        %v355 = vpop.permute.xlu0 %354
        %358 = vset.pattern.permute.xlu0 0
        %359 = vperm.xlu0 %358, %v264
        %v360 = vpop.permute.xlu0 %359
        %363 = vset.pattern.permute.xlu0 0
        %364 = vperm.xlu0 %363, %v265
        %v365 = vpop.permute.xlu0 %364
        %v367 = vlaneseq
        %v368 = vshrl.u32 %v367, 7
        %v369 = vsub.s32 1, %v368
        %v370 = vrot.slane %v266, %v369
        %v371 = vsub.f32 %v330, %v370
        %v372 = vsub.f32 %v335, %v370
        %v373 = vsub.f32 %v340, %v370
        %v374 = vsub.f32 %v345, %v370
        %v375 = vsub.f32 %v350, %v370
        %v376 = vsub.f32 %v355, %v370
        %v377 = vsub.f32 %v360, %v370
        %v378 = vsub.f32 %v365, %v370
        %v379 = vmul.f32 %v319, %v319
        %v380 = vmul.f32 %v320, %v320
        %v381 = vmul.f32 %v321, %v321
        %v382 = vmul.f32 %v322, %v322
        %v383 = vmul.f32 %v323, %v323
        %v384 = vmul.f32 %v324, %v324
        %v385 = vmul.f32 %v325, %v325
        %v386 = vmul.f32 %v326, %v326
        %v387 = vmul.f32 %v371, %v371
        %v388 = vmul.f32 %v372, %v372
        %v389 = vmul.f32 %v373, %v373
        %v390 = vmul.f32 %v374, %v374
        %v391 = vmul.f32 %v375, %v375
        %v392 = vmul.f32 %v376, %v376
        %v393 = vmul.f32 %v377, %v377
        %v394 = vmul.f32 %v378, %v378
        %v395 = vadd.f32 %v379, %v387
        %v396 = vadd.f32 %v380, %v388
        %v397 = vadd.f32 %v381, %v389
        %v398 = vadd.f32 %v382, %v390
        %v399 = vadd.f32 %v383, %v391
        %v400 = vadd.f32 %v384, %v392
        %v401 = vadd.f32 %v385, %v393
        %v402 = vadd.f32 %v386, %v394
        %v403 = vlaneseq
        %v404 = vshrl.u32 %v403, 7
        %v405 = vadd.s32 %v404, 8
        %v406 = vadd.s32 %v404, 16
        %v407 = vadd.s32 %v404, 24
        %v408 = vadd.s32 %v404, 32
        %v409 = vadd.s32 %v404, 40
        %v410 = vadd.s32 %v404, 48
        %v411 = vadd.s32 %v404, 56
        %v412 = vmin.f32 %v395, %v399
        %v413 = vmin.f32 %v396, %v400
        %v414 = vmin.f32 %v397, %v401
        %v415 = vmin.f32 %v398, %v402
        %v416 = vmin.f32 %v412, %v413
        %v417 = vmin.f32 %v414, %v415
        %v418 = vmin.f32 %v416, %v417
        %v419 = vrot.slane %v418, 4
        %v420 = vmin.f32 %v418, %v419
        %v421 = vrot.slane %v420, 2
        %v422 = vmin.f32 %v420, %v421
        %v423 = vrot.slane %v422, 1
        %v424 = vmin.f32 %v422, %v423
        %vm425 = vcmp.le.f32.partialorder %v395, %v424
        %vm426 = vcmp.le.f32.partialorder %v396, %v424
        %vm427 = vcmp.le.f32.partialorder %v397, %v424
        %vm428 = vcmp.le.f32.partialorder %v398, %v424
        %vm429 = vcmp.le.f32.partialorder %v399, %v424
        %vm430 = vcmp.le.f32.partialorder %v400, %v424
        %vm431 = vcmp.le.f32.partialorder %v401, %v424
        %vm432 = vcmp.le.f32.partialorder %v402, %v424
        %v433 = vsel %vm425, %v404, 64
        %v434 = vsel %vm426, %v405, 64
        %v435 = vsel %vm427, %v406, 64
        %v436 = vsel %vm428, %v407, 64
        %v437 = vsel %vm429, %v408, 64
        %v438 = vsel %vm430, %v409, 64
        %v439 = vsel %vm431, %v410, 64
        %v440 = vsel %vm432, %v411, 64
        %vm441 = vcmp.lt.s32.totalorder %v433, %v437
        %v442 = vsel %vm441, %v433, %v437
        %vm443 = vcmp.lt.s32.totalorder %v434, %v438
        %v444 = vsel %vm443, %v434, %v438
        %vm445 = vcmp.lt.s32.totalorder %v435, %v439
        %v446 = vsel %vm445, %v435, %v439
        %vm447 = vcmp.lt.s32.totalorder %v436, %v440
        %v448 = vsel %vm447, %v436, %v440
        %vm449 = vcmp.lt.s32.totalorder %v442, %v444
        %v450 = vsel %vm449, %v442, %v444
        %vm451 = vcmp.lt.s32.totalorder %v446, %v448
        %v452 = vsel %vm451, %v446, %v448
        %vm453 = vcmp.lt.s32.totalorder %v450, %v452
        %v454 = vsel %vm453, %v450, %v452
        %v455 = vrot.slane %v454, 4
        %vm456 = vcmp.lt.s32.totalorder %v454, %v455
        %v457 = vsel %vm456, %v454, %v455
        %v458 = vrot.slane %v457, 2
        %vm459 = vcmp.lt.s32.totalorder %v457, %v458
        %v460 = vsel %vm459, %v457, %v458
        %v461 = vrot.slane %v460, 1
        %vm462 = vcmp.lt.s32.totalorder %v460, %v461
        %v463 = vsel %vm462, %v460, %v461
        %vm464 = vcmp.eq.s32.totalorder %v404, %v463
        %vm465 = vcmp.eq.s32.totalorder %v405, %v463
        %vm466 = vcmp.eq.s32.totalorder %v406, %v463
        %vm467 = vcmp.eq.s32.totalorder %v407, %v463
        %vm468 = vcmp.eq.s32.totalorder %v408, %v463
        %vm469 = vcmp.eq.s32.totalorder %v409, %v463
        %vm470 = vcmp.eq.s32.totalorder %v410, %v463
        %vm471 = vcmp.eq.s32.totalorder %v411, %v463
        %v472 = vsel %vm464, 1, 0
        %v473 = vsel %vm465, 1, 0
        %v474 = vsel %vm466, 1, 0
        %v475 = vsel %vm467, 1, 0
        %v476 = vsel %vm468, 1, 0
        %v477 = vsel %vm469, 1, 0
        %v478 = vsel %vm470, 1, 0
        %v479 = vsel %vm471, 1, 0
        %v480 = vcvt.s32.f32 %v472
        %v481 = vcvt.s32.f32 %v473
        %v482 = vcvt.s32.f32 %v474
        %v483 = vcvt.s32.f32 %v475
        %v484 = vcvt.s32.f32 %v476
        %v485 = vcvt.s32.f32 %v477
        %v486 = vcvt.s32.f32 %v478
        %v487 = vcvt.s32.f32 %v479
        %v488 = vmax.f32 %v267, %v271
        %v489 = vmax.f32 %v268, %v272
        %v490 = vmax.f32 %v269, %v273
        %v491 = vmax.f32 %v270, %v274
        %v492 = vmax.f32 %v488, %v489
        %v493 = vmax.f32 %v490, %v491
        %v494 = vmax.f32 %v492, %v493
        %v495 = vrot.slane %v494, 4
        %v496 = vmax.f32 %v494, %v495
        %v497 = vrot.slane %v496, 2
        %v498 = vmax.f32 %v496, %v497
        %v499 = vrot.slane %v498, 1
        %v500 = vmax.f32 %v498, %v499
        %v501 = vsub.f32 %v267, %v500
        %v502 = vsub.f32 %v268, %v500
        %v503 = vsub.f32 %v269, %v500
        %v504 = vsub.f32 %v270, %v500
        %v505 = vsub.f32 %v271, %v500
        %v506 = vsub.f32 %v272, %v500
        %v507 = vsub.f32 %v273, %v500
        %v508 = vsub.f32 %v274, %v500
        %v509 = vmul.f32 %v501, 1.442695
        %v510 = vpow.pop %v509
        %v511 = vmul.f32 %v502, 1.442695
        %v512 = vpow.pop %v511
        %v513 = vmul.f32 %v503, 1.442695
        %v514 = vpow.pop %v513
        %v515 = vmul.f32 %v504, 1.442695
        %v516 = vpow.pop %v515
        %v517 = vmul.f32 %v505, 1.442695
        %v518 = vpow.pop %v517
        %v519 = vmul.f32 %v506, 1.442695
        %v520 = vpow.pop %v519
        %v521 = vmul.f32 %v507, 1.442695
        %v522 = vpow.pop %v521
        %v523 = vmul.f32 %v508, 1.442695
        %v524 = vpow.pop %v523
        %v525 = vadd.f32 %v510, %v512
        %v526 = vadd.f32 %v525, %v514
        %v527 = vadd.f32 %v526, %v516
        %v528 = vadd.f32 %v527, %v518
        %v529 = vadd.f32 %v528, %v520
        %v530 = vadd.f32 %v529, %v522
        %v531 = vadd.f32 %v530, %v524
        %v532 = vrot.slane %v531, 4
        %v533 = vadd.f32 %v531, %v532
        %v534 = vrot.slane %v533, 2
        %v535 = vadd.f32 %v533, %v534
        %v536 = vrot.slane %v535, 1
        %v537 = vadd.f32 %v535, %v536
        %v538 = vlog2.pop %v537
        %v539 = vmul.f32 %v538, 0.6931472
        %v540 = vadd.f32 %v500, %v539
        %v541 = vmul.f32 %v267, %v480
        %v542 = vmul.f32 %v268, %v481
        %v543 = vmul.f32 %v269, %v482
        %v544 = vmul.f32 %v270, %v483
        %v545 = vmul.f32 %v271, %v484
        %v546 = vmul.f32 %v272, %v485
        %v547 = vmul.f32 %v273, %v486
        %v548 = vmul.f32 %v274, %v487
        %v549 = vadd.f32 %v541, %v542
        %v550 = vadd.f32 %v549, %v543
        %v551 = vadd.f32 %v550, %v544
        %v552 = vadd.f32 %v551, %v545
        %v553 = vadd.f32 %v552, %v546
        %v554 = vadd.f32 %v553, %v547
        %v555 = vadd.f32 %v554, %v548
        %v556 = vrot.slane %v555, 4
        %v557 = vadd.f32 %v555, %v556
        %v558 = vrot.slane %v557, 2
        %v559 = vadd.f32 %v557, %v558
        %v560 = vrot.slane %v559, 1
        %v561 = vadd.f32 %v559, %v560
        %v562 = vsub.f32 %v540, %v561
        %vm563 = vcmp.gt.f32.partialorder %v266, 0.99
        %v564 = vsel %vm563, 1, 0
        %v565 = vcvt.s32.f32 %v564
        %v566 = vmax.f32 %v266, 0.0
        %v568 = vrot.slane %v266, 7
        %v570 = vmul.f32 %v266, %v568
        %v571 = vsub.f32 %v566, %v570
        %v572 = vand.u32 2147483647, %v266
        %v573 = vsub.f32 0.0, %v572
        %v574 = vmul.f32 %v573, 1.442695
        %v575 = vpow.pop %v574
        %v576 = vadd.f32 %v575, 1.0
        %v577 = vlog2.pop %v576
        %v578 = vmul.f32 %v577, 0.6931472
        %v579 = vadd.f32 %v571, %v578
        %v580 = vmul.f32 %v562, %v565
        %v582 = vrot.slane %v580, 2
        %vm584 = vcmask 1040384
        %v585 = vsel %vm584, %v582, 0.0
        %586 = vadd.xlane.f32.xlu0 %v585
        %v587 = vpop.xlane.xlu0 %586
        %v588 = vrot.slane %v587, 4
        %v589 = vadd.f32 %v587, %v588
        %v590 = vrot.slane %v589, 2
        %v591 = vadd.f32 %v589, %v590
        %v592 = vrot.slane %v591, 1
        %v593 = vadd.f32 %v591, %v592
        %s594 = vtos %v593
        %v596 = vrot.slane %v565, 2
        %v598 = vsel %vm584, %v596, 0.0
        %599 = vadd.xlane.f32.xlu0 %v598
        %v600 = vpop.xlane.xlu0 %599
        %v601 = vrot.slane %v600, 4
        %v602 = vadd.f32 %v600, %v601
        %v603 = vrot.slane %v602, 2
        %v604 = vadd.f32 %v602, %v603
        %v605 = vrot.slane %v604, 1
        %v606 = vadd.f32 %v604, %v605
        %s607 = vtos %v606
        %v609 = vrot.slane %v579, 3
        %v611 = vsel %vm584, %v609, 0.0
        %612 = vadd.xlane.f32.xlu0 %v611
        %v613 = vpop.xlane.xlu0 %612
        %v614 = vrot.slane %v613, 4
        %v615 = vadd.f32 %v613, %v614
        %v616 = vrot.slane %v615, 2
        %v617 = vadd.f32 %v615, %v616
        %v618 = vrot.slane %v617, 1
        %v619 = vadd.f32 %v617, %v618
        %s620 = vtos %v619
        %v621 = vlaneseq
        %v622 = vand.u32 %v621, 127
        %vm623 = vcmp.eq.s32.totalorder %v622, 0
        %v624 = vstv %s594
        %v625 = vsel %vm623, %v624, 0.0
        %vm626 = vcmp.eq.s32.totalorder %v622, 1
        %v627 = vstv %s607
        %v628 = vsel %vm626, %v627, 0.0
        %v629 = vadd.f32 %v625, %v628
        %vm630 = vcmp.eq.s32.totalorder %v622, 2
        %v631 = vstv %s620
        %v632 = vsel %vm630, %v631, 0.0
        %v633 = vadd.f32 %v629, %v632
        %v634 = vsel %vm584, %v633, 0.0
        %635 = vst [vmem:[%s233] sm:$0xff] %v634
        %s636 = sand.u32 %s138, 1
        %s637 = scalar_lea.sflag [#allocation3], %s636
        %s638 = sand.u32 %s138, 1
        %s639 = smul.addr %s638, 8
        %s640 = scalar_lea.vmem [#allocation2], %s639
        // Predicated region
        $region37: #{tpu_custom_call.1} parent=35 // pred_check
          %p641 = pneg %p148
        $region38: #{tpu_custom_call.1} parent=35 // pred_check_branch
          %643 = sbr.rel (%p641) target = $region40
        $region39: #{tpu_custom_call.1} parent=35 // pred_region
          %s644 = sadd.s32 %s22, %s23
          %s646 = ssub.s32 128, 128
          %647 = vsyncadd %s637, %s646
          %s648 = smul.addr %s644, 128
          %s649 = scalar_lea.hbm %s4, %s648
          %s651 = sshll.u32 %s640, 4
          %s652 = int_to_ptr.vmem [resolvable:$true] %s651
          %654 = dma.vmem_to_hbm [thread:$0]  %s652, 128, %s649, %s637
        $region40: #{tpu_custom_call.1} parent=35 // pred_fallthru
          _
      $region36: #{tpu_custom_call.1} parent=5 // pred_fallthru
        _
      %p655 = scmp.le.s32.totalorder 2, %s13
      // Predicated region
      $region41: #{tpu_custom_call.1} parent=5 // pred_check
        %p656 = pneg %p655
      $region42: #{tpu_custom_call.1} parent=5 // pred_check_branch
        %658 = sbr.rel (%p656) target = $region44
      $region43: #{tpu_custom_call.1} parent=5 // pred_region
        %s659 = ssub.s32 %s13, 2
        // Predicated region
        $region45: #{tpu_custom_call.1} parent=43 // pred_check
          %p660 = pneg %p154
        $region46: #{tpu_custom_call.1} parent=43 // pred_check_branch
          %662 = sbr.rel (%p660) target = $region48
        $region47: #{tpu_custom_call.1} parent=43 // pred_region
          %s663 = sand.u32 %s139, 1
          %s664 = scalar_lea.sflag [#allocation3], %s663
          %s665 = sand.u32 %s139, 1
          %s666 = smul.addr %s665, 8
          %s667 = scalar_lea.vmem [#allocation2], %s666
          %668 = dma.done %s664, 128
        $region48: #{tpu_custom_call.1} parent=43 // pred_fallthru
          _
      $region44: #{tpu_custom_call.1} parent=5 // pred_fallthru
        _
    $region6: #{tpu_custom_call.1} parent=1 // loop_footer
      %s17 = sadd.s32 1, %s13
    $region7: #{tpu_custom_call.1} parent=1 // loop_footer_branch
      %12 = sbr.rel target = $region3
    $region8: #{tpu_custom_call.1} parent=1 // loop_exit
      _
    %669 = vsyncpa [#allocation3], 1
    %s670 = scalar_lea.sflag [#allocation3], 1
    %671 = vsyncpa %s670, 1

</llo_original>
